<compile_context>
chip_gen: v7x
topology: tpu7x:2x2x1
jax: 0.10.0
libtpu: 0.0.40
codegen_flags: <defaults>
</compile_context>

<pallas_src>
import functools

import jax
import jax.numpy as jnp
from jax.experimental import pallas as pl
from jax.experimental.pallas import tpu as pltpu

GAMMA = 2.0  # matches FocalLoss(gamma=2.0)

_LANES = 128
_SUBLANES = 8
_DEFAULT_VMEM_PHYS = 128 * 1024 * 1024  # v5e / v6e per-TensorCore VMEM


def _tpu_vmem_budgets():
    """Generation-aware (scoped VMEM cap, per-buffer logits tile target) in bytes."""
    try:
        vmem_phys = int(pltpu.get_tpu_info().vmem_capacity_bytes)
    except Exception:  # non-TPU trace / older API: assume 128 MiB parts
        vmem_phys = _DEFAULT_VMEM_PHYS
    # Scoped limit at ~half of physical VMEM: ~32 MiB on v7x (64 MiB/TC),
    # ~64 MiB on v5e/v6e (128 MiB) -- roomy but never overshooting v7x.
    scoped_cap = vmem_phys // 2
    if vmem_phys <= 64 * 1024 * 1024:
        # v7x: 3.2 TB/s HBM -> the ~0.35 us grid-step overhead costs ~1.1 MB of
        # bandwidth per step; use big (8 MiB) logits tiles per pipeline buffer.
        tile_target = 8 * 1024 * 1024
    else:
        # v5e/v6e sit at ~85% of HBM roofline by ~2-4 MiB tiles.
        tile_target = 4 * 1024 * 1024
    return scoped_cap, tile_target


def _focal_loss_kernel(logits_ref, labels_ref, out_ref, *, gamma, total_b, tb):
    # logits_ref: [TB, C] native dtype; labels_ref: [TB, 1] int32;
    # out_ref: [1, 8, 128] f32 lane/sublane-dense partial-sum tile (unmasked vst).
    x = logits_ref[...]                       # keep native dtype for the exact passes
    labels = labels_ref[...]                  # [TB, 1] int32
    TB, C = x.shape

    # Row max and label select are exact in the native dtype (bf16/f32): run them
    # on the raw tile to halve vreg traffic for these two full-tile passes.
    row_max = jnp.max(x, axis=-1, keepdims=True)                       # [TB, 1]
    # (1, C) iota broadcast against (TB, 1) labels -> no (TB, C) int32 temp.
    col_ids = jax.lax.broadcasted_iota(jnp.int32, (1, C), 1)
    # NOTE: labels are assumed to be in [0, C). An out-of-range label (e.g. an
    # ignore_index like -100) selects nothing -> x_at_label = 0 and the row still
    # contributes ce = lse; the reference module has no ignore_index, so this is fine.
    x_at_label = jnp.sum(jnp.where(col_ids == labels, x, 0.0),
                         axis=-1, keepdims=True)                        # [TB, 1]

    # f32 only where precision matters: shifted logits, exp, log-sum-exp.
    row_max_f = row_max.astype(jnp.float32)
    shifted = x.astype(jnp.float32) - row_max_f                         # [TB, C] f32
    lse = jnp.log(jnp.sum(jnp.exp(shifted), axis=-1, keepdims=True))    # [TB, 1]
    shifted_at_label = x_at_label.astype(jnp.float32) - row_max_f       # [TB, 1]

    # cross entropy (reduction='none') + focal modulation
    ce = lse - shifted_at_label                                         # [TB, 1]
    pt = jnp.exp(-ce)
    w = jnp.maximum(1.0 - pt, 0.0)            # clamp: no negative base when ce ~ 0
    if gamma == 2.0:
        mod = w * w                           # VPU multiply, exact
    elif gamma == 1.0:
        mod = w
    else:
        mod = jnp.power(w, gamma)             # general fallback
    focal = mod * ce                          # [TB, 1]

    # Mask rows of a partial last block. This MUST stay a select (jnp.where), not a
    # multiply: padded rows flowed through exp/log above and may hold garbage.
    row_ids = pl.program_id(0) * tb + jax.lax.broadcasted_iota(jnp.int32, (TB, 1), 0)
    block_sum = jnp.sum(jnp.where(row_ids < total_b, focal, 0.0))

    out_ref[...] = jnp.full(out_ref.shape, block_sum, dtype=jnp.float32)


def focal_loss(logits, labels, gamma=GAMMA, block_rows=None):
    """logits: [B, C] (any float dtype), labels: [B] int -> scalar f32 focal loss."""
    B, C = logits.shape
    labels_2d = labels.astype(jnp.int32).reshape(B, 1)

    itemsize = jnp.dtype(logits.dtype).itemsize
    c_pad = max(C, _LANES)                    # lane padding when C < 128
    scoped_cap, tile_target = _tpu_vmem_budgets()

    # Per-row VMEM footprint (what one extra batch row of tile costs):
    #   2x double-buffered logits block            : 2 * c_pad * itemsize
    #   2x double-buffered lane-padded label block : 2 * 128 * 4
    #   ~2 full-tile f32 in-kernel temporaries     : 2 * c_pad * 4
    per_row_bytes = 2 * c_pad * itemsize + 2 * _LANES * 4 + 2 * c_pad * 4

    if block_rows is not None:
        tb = block_rows
    elif B <= _SUBLANES:
        tb = B                                 # single full-extent block
    else:
        headroom = 2 * 1024 * 1024
        tb_vmem = max(scoped_cap - headroom, per_row_bytes) // per_row_bytes
        tb_tile = max(tile_target // (c_pad * itemsize), 1)
        tb = min(tb_vmem, tb_tile, (B // _SUBLANES) * _SUBLANES)
        tb = max(_SUBLANES, (tb // _SUBLANES) * _SUBLANES)
    grid = pl.cdiv(B, tb)

    # TODO(synk): for vocabulary-scale C (a single (8, C) row-block no longer fits the
    # scoped VMEM budget -- hit ~2x earlier on v7x than on 128 MiB parts) add a second
    # grid axis over C with a streaming logsumexp.
    # TODO(synk): alpha (per-class weights) is None in the default module; if needed,
    # pass alpha as an extra [1, C] VMEM input and scale ce by its value at the label.

    working_set = tb * per_row_bytes + 4 * _SUBLANES * _LANES * 4
    vmem_limit = int(min(scoped_cap,
                         max(16 * 1024 * 1024, working_set + 2 * 1024 * 1024)))

    kernel = functools.partial(_focal_loss_kernel, gamma=gamma, total_b=B, tb=tb)

    partials = pl.pallas_call(
        kernel,
        out_shape=jax.ShapeDtypeStruct((grid, _SUBLANES, _LANES), jnp.float32),
        grid=(grid,),
        in_specs=[
            pl.BlockSpec((tb, C), lambda i: (i, 0)),
            # TODO(synk): if a trace shows the tiny strided label DMA gating the
            # pipeline, add pipeline_mode=pl.Buffered(3) on the logits spec.
            pl.BlockSpec((tb, 1), lambda i: (i, 0)),
        ],
        out_specs=pl.BlockSpec((1, _SUBLANES, _LANES), lambda i: (i, 0, 0)),
        compiler_params=pltpu.CompilerParams(
            # TODO(synk): confirm in a trace that "parallel" shards the batch grid
            # across both v7x TensorCores; if not, switch to pltpu.CORE_PARALLEL.
            dimension_semantics=("parallel",),
            vmem_limit_bytes=vmem_limit,
        ),
    )(logits, labels_2d)

    # tiny finalize in plain JAX: sum of per-block partial sums / global batch
    return jnp.sum(partials[:, 0, 0]) / jnp.float32(B)


def _reference(logits, labels, gamma=GAMMA):
    logp = jax.nn.log_softmax(logits.astype(jnp.float32), axis=-1)
    ce = -jnp.take_along_axis(logp, labels[:, None], axis=-1)[:, 0]
    pt = jnp.exp(-ce)
    return jnp.mean((1.0 - pt) ** gamma * ce)


if __name__ == "__main__":
    key = jax.random.PRNGKey(0)
    k1, k2, k3, k4, k5, k6 = jax.random.split(key, 6)

    # case 1: small shape consistent with the module (single block, f32)
    B, C = 8, 16
    logits = jax.random.normal(k1, (B, C), dtype=jnp.float32)
    labels = jax.random.randint(k2, (B,), 0, C, dtype=jnp.int32)
    loss = focal_loss(logits, labels)
    jax.block_until_ready(loss)
    ref = _reference(logits, labels)
    assert jnp.allclose(loss, ref, rtol=1e-5, atol=1e-6), (loss, ref)

    # case 2: multi-block grid with a partial (masked) last block
    B2, C2 = 40, 16
    logits2 = jax.random.normal(k3, (B2, C2), dtype=jnp.float32)
    labels2 = jax.random.randint(k4, (B2,), 0, C2, dtype=jnp.int32)
    loss2 = focal_loss(logits2, labels2, block_rows=16)   # grid = 3, last block partial
    jax.block_until_ready(loss2)
    ref2 = _reference(logits2, labels2)
    assert jnp.allclose(loss2, ref2, rtol=1e-5, atol=1e-6), (loss2, ref2)

    # case 3: bf16 logits (native-dtype max/select path, f32 exp/lse)
    B3, C3 = 24, 32
    logits3 = jax.random.normal(k5, (B3, C3), dtype=jnp.bfloat16)
    labels3 = jax.random.randint(k6, (B3,), 0, C3, dtype=jnp.int32)
    loss3 = focal_loss(logits3, labels3)
    jax.block_until_ready(loss3)
    ref3 = _reference(logits3, labels3)
    assert jnp.allclose(loss3, ref3, rtol=1e-5, atol=1e-5), (loss3, ref3)

    print("KERNEL_OK")
</pallas_src>

<mosaic_0001>
module attributes {stable_mosaic.version = 11 : i64} {
  func.func @_focal_loss_kernel(%arg0: i32, %arg1: memref<8x16xf32, #tpu.memory_space<vmem>>, %arg2: memref<8x1xi32, #tpu.memory_space<vmem>>, %arg3: memref<1x8x128xf32, #tpu.memory_space<vmem>>) attributes {dimension_semantics = [#tpu.dimension_semantics<parallel>], iteration_bounds = array<i64: 1>, scalar_prefetch = 0 : i64, scratch_operands = 0 : i64, tpu.core_type = #tpu.core_type<tc>, window_params = [{transform_indices = @transform_0, window_bounds = array<i64: 8, 16>}, {transform_indices = @transform_1, window_bounds = array<i64: 8, 1>}, {transform_indices = @transform_2, window_bounds = array<i64: 1, 8, 128>}]} {
    %c0 = arith.constant 0 : index
    %c0_0 = arith.constant 0 : index
    %0 = vector.load %arg1[%c0, %c0_0] : memref<8x16xf32, #tpu.memory_space<vmem>>, vector<8x16xf32>
    %c0_1 = arith.constant 0 : index
    %c0_2 = arith.constant 0 : index
    %1 = vector.load %arg2[%c0_1, %c0_2] : memref<8x1xi32, #tpu.memory_space<vmem>>, vector<8x1xi32>
    %cst = arith.constant dense<0xFF800000> : vector<8xf32>
    %2 = vector.multi_reduction <maximumf>, %0, %cst [1] : vector<8x16xf32> to vector<8xf32>
    %3 = vector.shape_cast %2 : vector<8xf32> to vector<8x1xf32>
    %4 = tpu.iota {dimensions = array<i32: 1>} : vector<1x16xi32>
    %5 = vector.broadcast %4 : vector<1x16xi32> to vector<8x16xi32>
    %6 = vector.broadcast %1 : vector<8x1xi32> to vector<8x16xi32>
    %7 = arith.cmpi eq, %5, %6 : vector<8x16xi32>
    %cst_3 = arith.constant 0.000000e+00 : f32
    %8 = vector.broadcast %cst_3 : f32 to vector<8x16xf32>
    %9 = arith.select %7, %0, %8 : vector<8x16xi1>, vector<8x16xf32>
    %cst_4 = arith.constant dense<0.000000e+00> : vector<8xf32>
    %10 = vector.multi_reduction <add>, %9, %cst_4 [1] : vector<8x16xf32> to vector<8xf32>
    %11 = vector.shape_cast %10 : vector<8xf32> to vector<8x1xf32>
    %12 = vector.broadcast %3 : vector<8x1xf32> to vector<8x16xf32>
    %13 = arith.subf %0, %12 : vector<8x16xf32>
    %14 = math.exp %13 : vector<8x16xf32>
    %cst_5 = arith.constant dense<0.000000e+00> : vector<8xf32>
    %15 = vector.multi_reduction <add>, %14, %cst_5 [1] : vector<8x16xf32> to vector<8xf32>
    %16 = vector.shape_cast %15 : vector<8xf32> to vector<8x1xf32>
    %17 = math.log %16 : vector<8x1xf32>
    %18 = arith.subf %11, %3 : vector<8x1xf32>
    %19 = arith.subf %17, %18 : vector<8x1xf32>
    %cst_6 = arith.constant 0.000000e+00 : f32
    %20 = vector.broadcast %cst_6 : f32 to vector<8x1xf32>
    %21 = arith.subf %20, %19 : vector<8x1xf32>
    %22 = math.exp %21 : vector<8x1xf32>
    %cst_7 = arith.constant 1.000000e+00 : f32
    %23 = vector.broadcast %cst_7 : f32 to vector<8x1xf32>
    %24 = arith.subf %23, %22 : vector<8x1xf32>
    %cst_8 = arith.constant 0.000000e+00 : f32
    %25 = vector.broadcast %cst_8 : f32 to vector<8x1xf32>
    %26 = arith.maximumf %24, %25 : vector<8x1xf32>
    %27 = arith.mulf %26, %26 : vector<8x1xf32>
    %28 = arith.mulf %27, %19 : vector<8x1xf32>
    %c8_i32 = arith.constant 8 : i32
    %29 = arith.muli %arg0, %c8_i32 : i32
    %30 = tpu.iota {dimensions = array<i32: 0>} : vector<8x1xi32>
    %31 = vector.broadcast %29 : i32 to vector<8x1xi32>
    %32 = arith.addi %31, %30 : vector<8x1xi32>
    %c8_i32_9 = arith.constant 8 : i32
    %33 = vector.broadcast %c8_i32_9 : i32 to vector<8x1xi32>
    %34 = arith.cmpi slt, %32, %33 : vector<8x1xi32>
    %cst_10 = arith.constant 0.000000e+00 : f32
    %35 = vector.broadcast %cst_10 : f32 to vector<8x1xf32>
    %36 = arith.select %34, %28, %35 : vector<8x1xi1>, vector<8x1xf32>
    %37 = vector.shape_cast %36 : vector<8x1xf32> to vector<1x8x1xf32>
    %cst_11 = arith.constant dense<0.000000e+00> : vector<1xf32>
    %38 = vector.multi_reduction <add>, %37, %cst_11 [1, 2] : vector<1x8x1xf32> to vector<1xf32>
    %39 = vector.shape_cast %38 : vector<1xf32> to vector<1x1x1xf32>
    %40 = vector.extract %39[0, 0, 0] : f32 from vector<1x1x1xf32>
    %41 = vector.broadcast %40 : f32 to vector<1x8x128xf32>
    %c0_12 = arith.constant 0 : index
    %c0_13 = arith.constant 0 : index
    %c0_14 = arith.constant 0 : index
    %42 = vector.load %arg3[%c0_12, %c0_13, %c0_14] : memref<1x8x128xf32, #tpu.memory_space<vmem>>, vector<1x8x128xf32>
    tpu.vector_store %arg3[%c0_12, %c0_13, %c0_14], %41 {strides = array<i32>} : memref<1x8x128xf32, #tpu.memory_space<vmem>>, vector<1x8x128xf32>,
    return
  }
  func.func @transform_0(%arg0: i32) -> (i32, i32) {
    %c0_i32 = arith.constant 0 : i32
    %c0_i32_0 = arith.constant 0 : i32
    return %arg0, %c0_i32 : i32, i32
  }
  func.func @transform_1(%arg0: i32) -> (i32, i32) {
    %c0_i32 = arith.constant 0 : i32
    %c0_i32_0 = arith.constant 0 : i32
    return %arg0, %c0_i32 : i32, i32
  }
  func.func @transform_2(%arg0: i32) -> (i32, i32, i32) {
    %c0_i32 = arith.constant 0 : i32
    %c0_i32_0 = arith.constant 0 : i32
    %c0_i32_1 = arith.constant 0 : i32
    return %arg0, %c0_i32, %c0_i32_0 : i32, i32, i32
  }
}

</mosaic_0001>

<llo_original>
// kernel: tpu_custom_call.1
$region0: #{tpu_custom_call.1}
  #allocation0 [shape = 'u32[]', space=smem, size = 0x4, offset = 0x4, fixed_abs, tag = 'smem constant byte address 0x4 - core index']
  #allocation1 [shape = 'u32[144,128]{1,0:T(1,128)}', space=vmem, size = 0x12000, scoped, tag = 'internal scratch']
  %s0 = inlined_call_operand.vmem [shape: f32[8,16], index: 0, kind: input, shape index: {}]
  %s1 = inlined_call_operand.vmem [shape: s32[8,1], index: 1, kind: input, shape index: {}]
  %s2 = inlined_call_operand.hbm [shape: f32[1,8,128], index: 2, kind: output, shape index: {}]
  %s3 = sld [smem:[#allocation0]]
  $region18: #{tpu_custom_call.1} parent=0
    _
  %s5 = ssub.s32 1, %s3
  %s6 = scalar_select 0, %s5, %s3
  $region1: #{tpu_custom_call.1} parent=0
    #allocation2 [shape = 'u8[4096]{0}', space=vmem, size = 0x1000, scoped, tag = 'output window, operand 0, single buffered']
    #allocation3 [shape = 's32[1]{0}', space=sflag, size = 0x4, scoped, tag = 'scoped memory for tpu_custom_call.1']
    %7 = vsyncpa [#allocation3], 0
    // Predicated region
    $region2: #{tpu_custom_call.1} parent=1 // pred_check
      _
    $region3: #{tpu_custom_call.1} parent=1 // pred_check_branch
      %9 = sbr.rel (0) target = $region5
    $region4: #{tpu_custom_call.1} parent=1 // pred_region
      _
    $region5: #{tpu_custom_call.1} parent=1 // pred_fallthru
      _
    // Predicated region
    $region6: #{tpu_custom_call.1} parent=1 // pred_check
      _
    $region7: #{tpu_custom_call.1} parent=1 // pred_check_branch
      %11 = sbr.rel (0) target = $region9
    $region8: #{tpu_custom_call.1} parent=1 // pred_region
      _
    $region9: #{tpu_custom_call.1} parent=1 // pred_fallthru
      _
    %v12 = vld [vmem:[%s0] sm:$0xff]
    %v13 = vld [vmem:[%s1] sm:$0xff]
    %vm14 = vcmask 130048
    %v15 = vsel %vm14, %v12, -inf
    %16 = vmax.xlane.f32.xlu0 %v15
    %v17 = vpop.xlane.xlu0 %16
    %v18 = vlaneseq
    %v19 = vand.u32 %v18, 127
    %20 = vset.pattern.permute.xlu0 0
    %21 = vperm.xlu0 %20, %v13
    %v22 = vpop.permute.xlu0 %21
    %vm23 = vcmp.eq.s32.totalorder %v19, %v22
    %v24 = vsel %vm23, %v12, 0.0
    %v25 = vsel %vm14, %v24, 0.0
    %26 = vadd.xlane.f32.xlu0 %v25
    %v27 = vpop.xlane.xlu0 %26
    %v28 = vsub.f32 %v12, %v17
    %v29 = vmul.f32 %v28, 1.442695
    %v30 = vpow.pop %v29
    %v31 = vsel %vm14, %v30, 0.0
    %32 = vadd.xlane.f32.xlu0 %v31
    %v33 = vpop.xlane.xlu0 %32
    %v34 = vlog2.pop %v33
    %v35 = vmul.f32 %v34, 0.6931472
    %v36 = vsub.f32 %v27, %v17
    %v37 = vsub.f32 %v35, %v36
    %v38 = vsub.f32 0.0, %v37
    %v39 = vmul.f32 %v38, 1.442695
    %v40 = vpow.pop %v39
    %v41 = vsub.f32 1.0, %v40
    %v42 = vmax.f32 %v41, 0.0
    %v43 = vmul.f32 %v42, %v42
    %v44 = vmul.f32 %v43, %v37
    %s45 = smul.u32 0, 8
    %v46 = vlaneseq
    %v47 = vshrl.u32 %v46, 7
    %v48 = vstv %s45
    %v49 = vadd.s32 %v48, %v47
    %vm50 = vcmp.lt.s32.totalorder %v49, 8
    %v51 = vsel %vm50, %v44, 0.0
    %vm52 = vcmask 7168
    %v53 = vsel %vm52, %v51, 0.0
    %54 = vadd.xlane.f32.xlu0 %v53
    %v55 = vpop.xlane.xlu0 %54
    %v56 = vrot.slane %v55, 4
    %v57 = vadd.f32 %v55, %v56
    %v58 = vrot.slane %v57, 2
    %v59 = vadd.f32 %v57, %v58
    %v60 = vrot.slane %v59, 1
    %v61 = vadd.f32 %v59, %v60
    %s62 = vtos %v61
    %v63 = vstv %s62
    %64 = vst [vmem:[#allocation2] sm:$0xff] %v63
    // Predicated region
    $region10: #{tpu_custom_call.1} parent=1 // pred_check
      _
    $region11: #{tpu_custom_call.1} parent=1 // pred_check_branch
      %66 = sbr.rel (0) target = $region13
    $region12: #{tpu_custom_call.1} parent=1 // pred_region
      %s68 = ssub.s32 128, 128
      %69 = vsyncadd [#allocation3], %s68
      %s71 = sshll.u32 [#allocation2], 4
      %s72 = int_to_ptr.vmem [resolvable:$true] %s71
      %74 = dma.vmem_to_hbm [thread:$0]  %s72, 128, %s2, [#allocation3]
    $region13: #{tpu_custom_call.1} parent=1 // pred_fallthru
      _
    // Predicated region
    $region14: #{tpu_custom_call.1} parent=1 // pred_check
      _
    $region15: #{tpu_custom_call.1} parent=1 // pred_check_branch
      %76 = sbr.rel (0) target = $region17
    $region16: #{tpu_custom_call.1} parent=1 // pred_region
      %77 = dma.done [#allocation3], 128
    $region17: #{tpu_custom_call.1} parent=1 // pred_fallthru
      _
    %78 = vsyncpa [#allocation3], 1

</llo_original>
